<compile_context>
chip_gen: v7x
topology: tpu7x:2x2x1
jax: 0.10.0
libtpu: 0.0.40
codegen_flags: <defaults>
</compile_context>

<pallas_src>
import functools
import math

import jax
import jax.numpy as jnp
from jax import lax
from jax.experimental import pallas as pl
from jax.experimental.pallas import tpu as pltpu


_INV_SQRT2 = 1.0 / math.sqrt(2.0)


def _gelu_exact(x):
    # PyTorch nn.GELU() default = exact erf-based GELU.
    # TODO(synk): on v7x (3.2 TB/s HBM) the erf polynomial over the bm x n2
    # output can become the binding VALU slot; jax.nn.gelu(approximate=True)
    # would move the transcendental to the EUP slot at a slight deviation from
    # torch's default.  Kept exact here for parity.
    return 0.5 * x * (1.0 + lax.erf(x * _INV_SQRT2))


def _linear1_kernel(x_ref, w1_ref, b1_ref, h_ref):
    """h = GELU(x @ W1 + b1), stored in the second-layer weight dtype."""
    x = x_ref[...].astype(w1_ref.dtype)
    h = jnp.dot(x, w1_ref[...], preferred_element_type=jnp.float32)
    h = h + b1_ref[...].astype(jnp.float32)
    # TODO(synk): torch Dropout(0.2) is identity in eval(); training-mode RNG
    # dropout (pltpu.prng_random_bits masking) intentionally not applied.
    h_ref[...] = _gelu_exact(h).astype(h_ref.dtype)


def _linear2_kernel(h_ref, w2_ref, b2_ref, o_ref):
    """y = GELU(h @ W2_coltile + b2_coltile) for one (batch, column) tile."""
    y = jnp.dot(h_ref[...], w2_ref[...], preferred_element_type=jnp.float32)
    y = y + b2_ref[...].astype(jnp.float32)
    o_ref[...] = _gelu_exact(y).astype(o_ref.dtype)


def _round_up(v, m):
    return (v + m - 1) // m * m


def _pick_col_tile(n2, col_tile):
    """Largest multiple of 128 that divides n2 and is <= col_tile (>= 128)."""
    cand = (min(col_tile, n2) // 128) * 128
    while cand >= 128:
        if n2 % cand == 0:
            return cand
        cand -= 128
    # n2 not a multiple of 128: only a full-width block is legal anyway.
    return n2


def _vmem_cap_bytes():
    """~85% of physical VMEM (v5e/v6e: 128 MiB, v7x: 64 MiB), safe fallback."""
    try:
        cap = int(0.85 * pltpu.get_tpu_info().vmem_capacity_bytes)
    except Exception:
        cap = 54 << 20  # conservative: fits v7x's 64 MiB
    return max(cap, 32 << 20)


@functools.partial(
    jax.jit,
    static_argnames=("seq_len", "output_c", "batch_tile", "col_tile", "out_dtype"),
)
def mapping_model_forward(x, w1, b1, w2, b2, *, seq_len, output_c,
                          batch_tile=256, col_tile=4096, out_dtype=jnp.float32):
    """x: (B, input_c) -> (B, seq_len, output_c).

    Weights are stored (in, out) (transposed vs. torch) and may be f32 or bf16;
    accumulation is always f32 on the MXU.  Passing bf16 weights / out_dtype is
    a documented precision deviation from the f32 torch reference.
    """
    B, d_in = x.shape
    hidden = w1.shape[1]
    n2 = w2.shape[1]
    assert n2 == seq_len * output_c, (n2, seq_len, output_c)

    b1 = b1.reshape(1, hidden)
    b2 = b2.reshape(1, n2)

    # Batch tile: multiple of 8 sublanes; shrink to the (8-rounded) batch for
    # small inputs, then pad B up to a tile multiple (no divisibility assert).
    bm = max(8, _round_up(min(batch_tile, _round_up(B, 8)), 8))
    B_pad = _round_up(B, bm)
    if B_pad != B:
        x = jnp.pad(x, ((0, B_pad - B), (0, 0)))

    # Column tile over the (huge) second-layer output dim.
    bn = _pick_col_tile(n2, col_tile)

    vmem_cap = _vmem_cap_bytes()
    h_dtype = w2.dtype  # h stored pre-cast for the second matmul

    # ---------------- Layer 1: h = GELU(x @ W1 + b1) ----------------
    est1 = (2 * bm * d_in * jnp.dtype(x.dtype).itemsize        # x double buffer
            + 2 * d_in * hidden * jnp.dtype(w1.dtype).itemsize  # W1 (resident, 2 bufs)
            + 2 * bm * hidden * jnp.dtype(h_dtype).itemsize     # h out double buffer
            + 2 * hidden * 4)                                    # b1
    h = pl.pallas_call(
        _linear1_kernel,
        out_shape=jax.ShapeDtypeStruct((B_pad, hidden), h_dtype),
        grid_spec=pltpu.PrefetchScalarGridSpec(
            num_scalar_prefetch=0,
            grid=(B_pad // bm,),
            in_specs=[
                pl.BlockSpec((bm, d_in), lambda i: (i, 0)),      # x batch tile
                pl.BlockSpec((d_in, hidden), lambda i: (0, 0)),  # W1 (whole, ~3 MB real)
                pl.BlockSpec((1, hidden), lambda i: (0, 0)),     # b1
            ],
            out_specs=pl.BlockSpec((bm, hidden), lambda i: (i, 0)),
        ),
        compiler_params=pltpu.CompilerParams(
            dimension_semantics=("parallel",),
            vmem_limit_bytes=min(max(16 << 20, int(est1 * 2)), vmem_cap),
        ),
    )(x, w1, b1)

    # ---------------- Layer 2: y = GELU(h @ W2 + b2) ----------------
    # Column axis OUTER, batch axis INNER: each W2 column tile is DMA'd once
    # and reused across every batch tile (h is the small thing re-streamed).
    est2 = (2 * hidden * bn * jnp.dtype(w2.dtype).itemsize      # W2 tile double buffer
            + 2 * bm * bn * jnp.dtype(out_dtype).itemsize        # out tile double buffer
            + 2 * bm * hidden * jnp.dtype(h_dtype).itemsize      # h tile double buffer
            + 2 * bn * 4)                                         # b2 tile
    out = pl.pallas_call(
        _linear2_kernel,
        out_shape=jax.ShapeDtypeStruct((B_pad, n2), out_dtype),
        grid_spec=pltpu.PrefetchScalarGridSpec(
            num_scalar_prefetch=0,
            grid=(n2 // bn, B_pad // bm),
            in_specs=[
                pl.BlockSpec((bm, hidden), lambda j, i: (i, 0)),  # h batch tile
                pl.BlockSpec((hidden, bn), lambda j, i: (0, j)),  # W2 column tile (streamed once)
                pl.BlockSpec((1, bn), lambda j, i: (0, j)),       # b2 column tile
            ],
            out_specs=pl.BlockSpec((bm, bn), lambda j, i: (i, j)),  # lane-dense out tile
        ),
        compiler_params=pltpu.CompilerParams(
            dimension_semantics=("parallel", "parallel"),
            vmem_limit_bytes=min(max(32 << 20, int(est2 * 1.5)), vmem_cap),
        ),
    )(h, w2, b2)

    return out[:B].reshape(B, seq_len, output_c)


def _reference(x, w1, b1, w2, b2, seq_len, output_c):
    h = _gelu_exact(x @ w1 + b1)
    y = _gelu_exact(h @ w2 + b2)
    return y.reshape(-1, seq_len, output_c)


if __name__ == "__main__":
    # Small shapes consistent with the module structure
    # (real module: input_c=768, hidden=1024, output_c=1024, max_length=77 -> seq=76)
    BATCH = 10             # deliberately not tile-aligned -> exercises batch padding
    INPUT_C = 128          # scaled-down 768
    HIDDEN = 256           # scaled-down 1024
    OUTPUT_C = 256         # scaled-down 1024
    MAX_LENGTH = 5         # scaled-down 77
    SEQ_LEN = MAX_LENGTH - 1
    N2 = SEQ_LEN * OUTPUT_C

    key = jax.random.PRNGKey(0)
    kx, k1, k2, k3, k4 = jax.random.split(key, 5)

    x = jax.random.normal(kx, (BATCH, INPUT_C), dtype=jnp.float32)

    # Deterministic parameter init (shapes match torch Linear, transposed: (in, out))
    w1 = jax.random.normal(k1, (INPUT_C, HIDDEN), dtype=jnp.float32) / math.sqrt(INPUT_C)
    b1 = jax.random.normal(k2, (HIDDEN,), dtype=jnp.float32) * 0.02
    w2 = jax.random.normal(k3, (HIDDEN, N2), dtype=jnp.float32) / math.sqrt(HIDDEN)
    b2 = jax.random.normal(k4, (N2,), dtype=jnp.float32) * 0.02

    # f32 path (exact parity with the torch module in eval mode).
    # Small tiles for the demo so the column-outer W2 streaming path is really
    # exercised (layer-2 grid = (4, 1)); real-scale defaults are 256 / 4096.
    out = mapping_model_forward(
        x, w1, b1, w2, b2,
        seq_len=SEQ_LEN, output_c=OUTPUT_C,
        batch_tile=16, col_tile=256,
    )
    out = jax.block_until_ready(out)

    ref = _reference(x, w1, b1, w2, b2, SEQ_LEN, OUTPUT_C)
    assert out.shape == (BATCH, SEQ_LEN, OUTPUT_C), out.shape
    assert jnp.allclose(out, ref, atol=1e-4, rtol=1e-4), float(
        jnp.max(jnp.abs(out - ref)))

    # Default (real-scale) tile configuration also runs on the small shapes.
    out_def = mapping_model_forward(
        x, w1, b1, w2, b2, seq_len=SEQ_LEN, output_c=OUTPUT_C)
    out_def = jax.block_until_ready(out_def)
    assert jnp.allclose(out_def, ref, atol=1e-4, rtol=1e-4)

    # bf16 weight-streaming path (halves the dominant W2 HBM traffic at real
    # scale; mandatory-grade on v5e).  Deliberate precision deviation.
    out_bf16 = mapping_model_forward(
        x, w1.astype(jnp.bfloat16), b1, w2.astype(jnp.bfloat16), b2,
        seq_len=SEQ_LEN, output_c=OUTPUT_C,
        batch_tile=16, col_tile=256,
    )
    out_bf16 = jax.block_until_ready(out_bf16)
    assert out_bf16.shape == (BATCH, SEQ_LEN, OUTPUT_C), out_bf16.shape
    assert bool(jnp.all(jnp.isfinite(out_bf16)))
    assert jnp.allclose(out_bf16, ref, atol=1e-1, rtol=1e-1)

    print("KERNEL_OK")
</pallas_src>

<mosaic_0001>
module attributes {stable_mosaic.version = 11 : i64} {
  func.func @_linear1_kernel(%arg0: i32, %arg1: memref<16x128xf32, #tpu.memory_space<vmem>>, %arg2: memref<128x256xf32, #tpu.memory_space<vmem>>, %arg3: memref<1x256xf32, #tpu.memory_space<vmem>>, %arg4: memref<16x256xf32, #tpu.memory_space<vmem>>) attributes {dimension_semantics = [#tpu.dimension_semantics<parallel>], iteration_bounds = array<i64: 1>, scalar_prefetch = 0 : i64, scratch_operands = 0 : i64, tpu.core_type = #tpu.core_type<tc>, window_params = [{transform_indices = @transform_0, window_bounds = array<i64: 16, 128>}, {pipeline_mode = #tpu.pipeline_mode<synchronous>, transform_indices = @transform_1, window_bounds = array<i64: 128, 256>}, {pipeline_mode = #tpu.pipeline_mode<synchronous>, transform_indices = @transform_2, window_bounds = array<i64: 1, 256>}, {transform_indices = @transform_3, window_bounds = array<i64: 16, 256>}]} {
    %c0 = arith.constant 0 : index
    %c0_0 = arith.constant 0 : index
    %0 = vector.load %arg1[%c0, %c0_0] : memref<16x128xf32, #tpu.memory_space<vmem>>, vector<16x128xf32>
    %c0_1 = arith.constant 0 : index
    %c0_2 = arith.constant 0 : index
    %1 = vector.load %arg2[%c0_1, %c0_2] : memref<128x256xf32, #tpu.memory_space<vmem>>, vector<128x256xf32>
    %cst = arith.constant dense<0.000000e+00> : vector<16x256xf32>
    %2 = tpu.matmul %0, %1, %cst {dimension_numbers = #tpu.dot_dimension_numbers<[1], [0], [0], [1], [0, 0, 1, 1], [], []>} : vector<16x128xf32>, vector<128x256xf32>, vector<16x256xf32> -> vector<16x256xf32>
    %c0_3 = arith.constant 0 : index
    %c0_4 = arith.constant 0 : index
    %3 = vector.load %arg3[%c0_3, %c0_4] : memref<1x256xf32, #tpu.memory_space<vmem>>, vector<1x256xf32>
    %4 = vector.broadcast %3 : vector<1x256xf32> to vector<16x256xf32>
    %5 = arith.addf %2, %4 : vector<16x256xf32>
    %cst_5 = arith.constant 5.000000e-01 : f32
    %6 = vector.broadcast %cst_5 : f32 to vector<16x256xf32>
    %7 = arith.mulf %6, %5 : vector<16x256xf32>
    %cst_6 = arith.constant 0.707106769 : f32
    %8 = vector.broadcast %cst_6 : f32 to vector<16x256xf32>
    %9 = arith.mulf %5, %8 : vector<16x256xf32>
    %10 = math.erf %9 : vector<16x256xf32>
    %cst_7 = arith.constant 1.000000e+00 : f32
    %11 = vector.broadcast %cst_7 : f32 to vector<16x256xf32>
    %12 = arith.addf %11, %10 : vector<16x256xf32>
    %13 = arith.mulf %7, %12 : vector<16x256xf32>
    %c0_8 = arith.constant 0 : index
    %c0_9 = arith.constant 0 : index
    %14 = vector.load %arg4[%c0_8, %c0_9] : memref<16x256xf32, #tpu.memory_space<vmem>>, vector<16x256xf32>
    tpu.vector_store %arg4[%c0_8, %c0_9], %13 {strides = array<i32>} : memref<16x256xf32, #tpu.memory_space<vmem>>, vector<16x256xf32>,
    return
  }
  func.func @transform_0(%arg0: i32) -> (i32, i32) {
    %c0_i32 = arith.constant 0 : i32
    %c0_i32_0 = arith.constant 0 : i32
    return %arg0, %c0_i32 : i32, i32
  }
  func.func @transform_1(%arg0: i32) -> (i32, i32) {
    %c0_i32 = arith.constant 0 : i32
    %c0_i32_0 = arith.constant 0 : i32
    %c0_i32_1 = arith.constant 0 : i32
    return %c0_i32, %c0_i32_0 : i32, i32
  }
  func.func @transform_2(%arg0: i32) -> (i32, i32) {
    %c0_i32 = arith.constant 0 : i32
    %c0_i32_0 = arith.constant 0 : i32
    %c0_i32_1 = arith.constant 0 : i32
    return %c0_i32, %c0_i32_0 : i32, i32
  }
  func.func @transform_3(%arg0: i32) -> (i32, i32) {
    %c0_i32 = arith.constant 0 : i32
    %c0_i32_0 = arith.constant 0 : i32
    return %arg0, %c0_i32 : i32, i32
  }
}

module attributes {stable_mosaic.version = 11 : i64} {
  func.func @_linear2_kernel(%arg0: i32, %arg1: i32, %arg2: memref<16x256xf32, #tpu.memory_space<vmem>>, %arg3: memref<256x256xf32, #tpu.memory_space<vmem>>, %arg4: memref<1x256xf32, #tpu.memory_space<vmem>>, %arg5: memref<16x256xf32, #tpu.memory_space<vmem>>) attributes {dimension_semantics = [#tpu.dimension_semantics<parallel>, #tpu.dimension_semantics<parallel>], iteration_bounds = array<i64: 4, 1>, scalar_prefetch = 0 : i64, scratch_operands = 0 : i64, tpu.core_type = #tpu.core_type<tc>, window_params = [{transform_indices = @transform_0, window_bounds = array<i64: 16, 256>}, {transform_indices = @transform_1, window_bounds = array<i64: 256, 256>}, {transform_indices = @transform_2, window_bounds = array<i64: 1, 256>}, {transform_indices = @transform_3, window_bounds = array<i64: 16, 256>}]} {
    %c0 = arith.constant 0 : index
    %c0_0 = arith.constant 0 : index
    %0 = vector.load %arg2[%c0, %c0_0] : memref<16x256xf32, #tpu.memory_space<vmem>>, vector<16x256xf32>
    %c0_1 = arith.constant 0 : index
    %c0_2 = arith.constant 0 : index
    %1 = vector.load %arg3[%c0_1, %c0_2] : memref<256x256xf32, #tpu.memory_space<vmem>>, vector<256x256xf32>
    %cst = arith.constant dense<0.000000e+00> : vector<16x256xf32>
    %2 = tpu.matmul %0, %1, %cst {dimension_numbers = #tpu.dot_dimension_numbers<[1], [0], [0], [1], [0, 0, 1, 1], [], []>} : vector<16x256xf32>, vector<256x256xf32>, vector<16x256xf32> -> vector<16x256xf32>
    %c0_3 = arith.constant 0 : index
    %c0_4 = arith.constant 0 : index
    %3 = vector.load %arg4[%c0_3, %c0_4] : memref<1x256xf32, #tpu.memory_space<vmem>>, vector<1x256xf32>
    %4 = vector.broadcast %3 : vector<1x256xf32> to vector<16x256xf32>
    %5 = arith.addf %2, %4 : vector<16x256xf32>
    %cst_5 = arith.constant 5.000000e-01 : f32
    %6 = vector.broadcast %cst_5 : f32 to vector<16x256xf32>
    %7 = arith.mulf %6, %5 : vector<16x256xf32>
    %cst_6 = arith.constant 0.707106769 : f32
    %8 = vector.broadcast %cst_6 : f32 to vector<16x256xf32>
    %9 = arith.mulf %5, %8 : vector<16x256xf32>
    %10 = math.erf %9 : vector<16x256xf32>
    %cst_7 = arith.constant 1.000000e+00 : f32
    %11 = vector.broadcast %cst_7 : f32 to vector<16x256xf32>
    %12 = arith.addf %11, %10 : vector<16x256xf32>
    %13 = arith.mulf %7, %12 : vector<16x256xf32>
    %c0_8 = arith.constant 0 : index
    %c0_9 = arith.constant 0 : index
    %14 = vector.load %arg5[%c0_8, %c0_9] : memref<16x256xf32, #tpu.memory_space<vmem>>, vector<16x256xf32>
    tpu.vector_store %arg5[%c0_8, %c0_9], %13 {strides = array<i32>} : memref<16x256xf32, #tpu.memory_space<vmem>>, vector<16x256xf32>,
    return
  }
  func.func @transform_0(%arg0: i32, %arg1: i32) -> (i32, i32) {
    %c0_i32 = arith.constant 0 : i32
    %c0_i32_0 = arith.constant 0 : i32
    return %arg1, %c0_i32 : i32, i32
  }
  func.func @transform_1(%arg0: i32, %arg1: i32) -> (i32, i32) {
    %c0_i32 = arith.constant 0 : i32
    %c0_i32_0 = arith.constant 0 : i32
    return %c0_i32, %arg0 : i32, i32
  }
  func.func @transform_2(%arg0: i32, %arg1: i32) -> (i32, i32) {
    %c0_i32 = arith.constant 0 : i32
    %c0_i32_0 = arith.constant 0 : i32
    return %c0_i32, %arg0 : i32, i32
  }
  func.func @transform_3(%arg0: i32, %arg1: i32) -> (i32, i32) {
    %c0_i32 = arith.constant 0 : i32
    return %arg1, %arg0 : i32, i32
  }
}

</mosaic_0001>

<llo_original>
// kernel: mapping_model_forward.2
$region0: #{mapping_model_forward.2}
  #allocation0 [shape = 'u32[]', space=smem, size = 0x4, offset = 0x4, fixed_abs, tag = 'smem constant byte address 0x4 - core index']
  #allocation1 [shape = 'u32[144,128]{1,0:T(1,128)}', space=vmem, size = 0x12000, scoped, tag = 'internal scratch']
  %s0 = inlined_call_operand.vmem [shape: f32[16,128], index: 0, kind: input, shape index: {}]
  %s1 = inlined_call_operand.hbm [shape: f32[128,256], index: 1, kind: input, shape index: {}]
  %s2 = inlined_call_operand.vmem [shape: f32[1,256], index: 2, kind: input, shape index: {}]
  %s3 = inlined_call_operand.vmem [shape: f32[16,256], index: 3, kind: output, shape index: {}]
  %s4 = sld [smem:[#allocation0]]
  $region26: #{mapping_model_forward.2} parent=0
    _
  %s6 = ssub.s32 1, %s4
  %s7 = scalar_select 0, %s6, %s4
  $region1: #{mapping_model_forward.2} parent=0
    #allocation2 [shape = 'u8[131072]{0}', space=vmem, size = 0x20000, scoped, tag = 'input window, operand 1, single buffered']
    #allocation3 [shape = 's32[1]{0}', space=sflag, size = 0x4, scoped, tag = 'scoped memory for mapping_model_forward.2']
    %8 = vsyncpa [#allocation3], 0
    // Predicated region
    $region2: #{mapping_model_forward.2} parent=1 // pred_check
      _
    $region3: #{mapping_model_forward.2} parent=1 // pred_check_branch
      %10 = sbr.rel (0) target = $region5
    $region4: #{mapping_model_forward.2} parent=1 // pred_region
      _
    $region5: #{mapping_model_forward.2} parent=1 // pred_fallthru
      _
    // Predicated region
    $region6: #{mapping_model_forward.2} parent=1 // pred_check
      _
    $region7: #{mapping_model_forward.2} parent=1 // pred_check_branch
      %12 = sbr.rel (0) target = $region9
    $region8: #{mapping_model_forward.2} parent=1 // pred_region
      %s14 = ssub.s32 4096, 4096
      %15 = vsyncadd [#allocation3], %s14
      %s16 = sshll.u32 [#allocation2], 4
      %s17 = int_to_ptr.vmem [resolvable:$true] %s16
      %22 = dma.hbm_to_vmem [thread:$0]  %s1, 4096, %s17, [#allocation3], 256, 256, 16
    $region9: #{mapping_model_forward.2} parent=1 // pred_fallthru
      _
    // Predicated region
    $region10: #{mapping_model_forward.2} parent=1 // pred_check
      _
    $region11: #{mapping_model_forward.2} parent=1 // pred_check_branch
      %24 = sbr.rel (0) target = $region13
    $region12: #{mapping_model_forward.2} parent=1 // pred_region
      _
    $region13: #{mapping_model_forward.2} parent=1 // pred_fallthru
      _
    // Predicated region
    $region14: #{mapping_model_forward.2} parent=1 // pred_check
      _
    $region15: #{mapping_model_forward.2} parent=1 // pred_check_branch
      %26 = sbr.rel (0) target = $region17
    $region16: #{mapping_model_forward.2} parent=1 // pred_region
      %27 = dma.done [#allocation3], 4096
    $region17: #{mapping_model_forward.2} parent=1 // pred_fallthru
      _
    %v28 = vld [vmem:[%s0] sm:$0xff]
    %v29 = vld [vmem:[%s0 + $0x8] sm:$0xff]
    %v30 = vld [vmem:[#allocation2] sm:$0xff]
    %v31 = vld [vmem:[#allocation2 + $0x8] sm:$0xff]
    %v32 = vld [vmem:[#allocation2 + $0x10] sm:$0xff]
    %v33 = vld [vmem:[#allocation2 + $0x18] sm:$0xff]
    %v34 = vld [vmem:[#allocation2 + $0x20] sm:$0xff]
    %v35 = vld [vmem:[#allocation2 + $0x28] sm:$0xff]
    %v36 = vld [vmem:[#allocation2 + $0x30] sm:$0xff]
    %v37 = vld [vmem:[#allocation2 + $0x38] sm:$0xff]
    %v38 = vld [vmem:[#allocation2 + $0x40] sm:$0xff]
    %v39 = vld [vmem:[#allocation2 + $0x48] sm:$0xff]
    %v40 = vld [vmem:[#allocation2 + $0x50] sm:$0xff]
    %v41 = vld [vmem:[#allocation2 + $0x58] sm:$0xff]
    %v42 = vld [vmem:[#allocation2 + $0x60] sm:$0xff]
    %v43 = vld [vmem:[#allocation2 + $0x68] sm:$0xff]
    %v44 = vld [vmem:[#allocation2 + $0x70] sm:$0xff]
    %v45 = vld [vmem:[#allocation2 + $0x78] sm:$0xff]
    %v46 = vld [vmem:[#allocation2 + $0x80] sm:$0xff]
    %v47 = vld [vmem:[#allocation2 + $0x88] sm:$0xff]
    %v48 = vld [vmem:[#allocation2 + $0x90] sm:$0xff]
    %v49 = vld [vmem:[#allocation2 + $0x98] sm:$0xff]
    %v50 = vld [vmem:[#allocation2 + $0xa0] sm:$0xff]
    %v51 = vld [vmem:[#allocation2 + $0xa8] sm:$0xff]
    %v52 = vld [vmem:[#allocation2 + $0xb0] sm:$0xff]
    %v53 = vld [vmem:[#allocation2 + $0xb8] sm:$0xff]
    %v54 = vld [vmem:[#allocation2 + $0xc0] sm:$0xff]
    %v55 = vld [vmem:[#allocation2 + $0xc8] sm:$0xff]
    %v56 = vld [vmem:[#allocation2 + $0xd0] sm:$0xff]
    %v57 = vld [vmem:[#allocation2 + $0xd8] sm:$0xff]
    %v58 = vld [vmem:[#allocation2 + $0xe0] sm:$0xff]
    %v59 = vld [vmem:[#allocation2 + $0xe8] sm:$0xff]
    %v60 = vld [vmem:[#allocation2 + $0xf0] sm:$0xff]
    %v61 = vld [vmem:[#allocation2 + $0xf8] sm:$0xff]
    %v62 = vld [vmem:[%s2] sm:$0x3]
    %v64 = vlaneseq
    %v65 = vshrl.u32 %v64, 7
    %v66 = vsub.s32 0, %v65
    %v67 = vrot.slane %v62, %v66
    %v68 = vlaneseq
    %v69 = vshrl.u32 %v68, 7
    %v70 = vsub.s32 1, %v69
    %v71 = vrot.slane %v62, %v70
    %74 = vmatprep.subr.mxu0 %v31
    %75 = vmatpush1.msra.mxu0 %v30
    %76 = vmatprep.subr.mxu0 %v33
    %77 = vmatpush1.msra.mxu0 %v32
    %78 = vmatprep.subr.mxu0 %v35
    %79 = vmatpush1.msra.mxu0 %v34
    %80 = vmatprep.subr.mxu0 %v37
    %81 = vmatpush1.msra.mxu0 %v36
    %82 = vmatprep.subr.mxu0 %v39
    %83 = vmatpush1.msra.mxu0 %v38
    %84 = vmatprep.subr.mxu0 %v41
    %85 = vmatpush1.msra.mxu0 %v40
    %86 = vmatprep.subr.mxu0 %v43
    %87 = vmatpush1.msra.mxu0 %v42
    %88 = vmatprep.subr.mxu0 %v45
    %89 = vmatpush1.msra.mxu0 %v44
    %90 = vmatprep.subr.mxu0 %v47
    %91 = vmatpush1.msra.mxu0 %v46
    %92 = vmatprep.subr.mxu0 %v49
    %93 = vmatpush1.msra.mxu0 %v48
    %94 = vmatprep.subr.mxu0 %v51
    %95 = vmatpush1.msra.mxu0 %v50
    %96 = vmatprep.subr.mxu0 %v53
    %97 = vmatpush1.msra.mxu0 %v52
    %98 = vmatprep.subr.mxu0 %v55
    %99 = vmatpush1.msra.mxu0 %v54
    %100 = vmatprep.subr.mxu0 %v57
    %101 = vmatpush1.msra.mxu0 %v56
    %102 = vmatprep.subr.mxu0 %v59
    %103 = vmatpush1.msra.mxu0 %v58
    %104 = vmatprep.subr.mxu0 %v61
    %105 = vmatpush1.msra.mxu0 %v60
    %106 = vmatprep.subr.mxu0 0.0
    %107 = vmatpush1.msra.mxu0 0.0
    %108 = vmatprep.subr.mxu0 0.0
    %109 = vmatpush1.msra.mxu0 0.0
    %110 = vmatprep.subr.mxu0 0.0
    %111 = vmatpush1.msra.mxu0 0.0
    %112 = vmatprep.subr.mxu0 0.0
    %113 = vmatpush1.msra.mxu0 0.0
    %114 = vmatprep.subr.mxu0 0.0
    %115 = vmatpush1.msra.mxu0 0.0
    %116 = vmatprep.subr.mxu0 0.0
    %117 = vmatpush1.msra.mxu0 0.0
    %118 = vmatprep.subr.mxu0 0.0
    %119 = vmatpush1.msra.mxu0 0.0
    %120 = vmatprep.subr.mxu0 0.0
    %121 = vmatpush1.msra.mxu0 0.0
    %122 = vmatprep.subr.mxu0 0.0
    %123 = vmatpush1.msra.mxu0 0.0
    %124 = vmatprep.subr.mxu0 0.0
    %125 = vmatpush1.msra.mxu0 0.0
    %126 = vmatprep.subr.mxu0 0.0
    %127 = vmatpush1.msra.mxu0 0.0
    %128 = vmatprep.subr.mxu0 0.0
    %129 = vmatpush1.msra.mxu0 0.0
    %130 = vmatprep.subr.mxu0 0.0
    %131 = vmatpush1.msra.mxu0 0.0
    %132 = vmatprep.subr.mxu0 0.0
    %133 = vmatpush1.msra.mxu0 0.0
    %134 = vmatprep.subr.mxu0 0.0
    %135 = vmatpush1.msra.mxu0 0.0
    %136 = vmatprep.subr.mxu0 0.0
    %137 = vmatpush1.msra.mxu0 0.0
    %138 = vmatprep.mubr.f32.mxu0 0.0
    %139 = vmatmul.mubr.f32.gmra.mrb[0].mxu0 %v28
    %v140 = vpop.f32.mrb[0].mxu0
    %v141 = vadd.f32 %v67, %v140
    %v142 = vpop.f32.mrb[0].mxu0
    %v143 = vadd.f32 %v71, %v142
    %144 = vmatprep.mubr.f32.mxu0 0.0
    %145 = vmatmul.mubr.f32.gmra.mrb[0].mxu0 %v29
    %v146 = vpop.f32.mrb[0].mxu0
    %v147 = vadd.f32 %v67, %v146
    %v148 = vpop.f32.mrb[0].mxu0
    %v149 = vadd.f32 %v71, %v148
    %150 = vdwg.mxu0
    %v151 = vmul.f32 %v141, 0.5
    %v152 = vmul.f32 %v143, 0.5
    %v153 = vmul.f32 %v147, 0.5
    %v154 = vmul.f32 %v149, 0.5
    %v155 = vmul.f32 %v141, 0.70710677
    %v156 = vmul.f32 %v143, 0.70710677
    %v157 = vmul.f32 %v147, 0.70710677
    %v158 = vmul.f32 %v149, 0.70710677
    %v159 = verf.f32.pop %v155
    %v160 = verf.f32.pop %v156
    %v161 = verf.f32.pop %v157
    %v162 = verf.f32.pop %v158
    %v163 = vadd.f32 %v159, 1.0
    %v164 = vadd.f32 %v160, 1.0
    %v165 = vadd.f32 %v161, 1.0
    %v166 = vadd.f32 %v162, 1.0
    %v167 = vmul.f32 %v151, %v163
    %v168 = vmul.f32 %v152, %v164
    %v169 = vmul.f32 %v153, %v165
    %v170 = vmul.f32 %v154, %v166
    %171 = vst [vmem:[%s3] sm:$0xff] %v167
    %172 = vst [vmem:[%s3 + $0x8] sm:$0xff] %v168
    %173 = vst [vmem:[%s3 + $0x10] sm:$0xff] %v169
    %174 = vst [vmem:[%s3 + $0x18] sm:$0xff] %v170
    // Predicated region
    $region18: #{mapping_model_forward.2} parent=1 // pred_check
      _
    $region19: #{mapping_model_forward.2} parent=1 // pred_check_branch
      %176 = sbr.rel (0) target = $region21
    $region20: #{mapping_model_forward.2} parent=1 // pred_region
      _
    $region21: #{mapping_model_forward.2} parent=1 // pred_fallthru
      _
    // Predicated region
    $region22: #{mapping_model_forward.2} parent=1 // pred_check
      _
    $region23: #{mapping_model_forward.2} parent=1 // pred_check_branch
      %178 = sbr.rel (0) target = $region25
    $region24: #{mapping_model_forward.2} parent=1 // pred_region
      _
    $region25: #{mapping_model_forward.2} parent=1 // pred_fallthru
      _
    %179 = vsyncpa [#allocation3], 1

// kernel: mapping_model_forward.3
$region0: #{mapping_model_forward.3}
  #allocation0 [shape = 'u32[]', space=smem, size = 0x4, offset = 0x4, fixed_abs, tag = 'smem constant byte address 0x4 - core index']
  #allocation1 [shape = 'u32[144,128]{1,0:T(1,128)}', space=vmem, size = 0x12000, scoped, tag = 'internal scratch']
  %s0 = inlined_call_operand.vmem [shape: f32[16,256], index: 0, kind: input, shape index: {}]
  %s1 = inlined_call_operand.hbm [shape: f32[256,1024], index: 1, kind: input, shape index: {}]
  %s2 = inlined_call_operand.vmem [shape: f32[1,1024], index: 2, kind: input, shape index: {}]
  %s3 = inlined_call_operand.vmem [shape: f32[16,1024], index: 3, kind: output, shape index: {}]
  %s4 = sld [smem:[#allocation0]]
  $region68: #{mapping_model_forward.3} parent=0
    _
  %s6 = ssub.s32 1, %s4
  %s7 = scalar_select 0, %s6, %s4
  $region1: #{mapping_model_forward.3} parent=0
    #allocation2 [shape = 'u8[524288]{0}', space=vmem, size = 0x80000, scoped, tag = 'input window, operand 1']
    #allocation3 [shape = 's32[2]{0}', space=sflag, size = 0x8, scoped, tag = 'scoped memory for mapping_model_forward.3']
    #allocation4 [shape = 'u8[32768]{0}', space=vmem, size = 0x8000, scoped, tag = 'output window, operand 0']
    %8 = vsyncpa [#allocation3], 0
    %s9 = scalar_lea.sflag [#allocation3], 1
    %10 = vsyncpa %s9, 0
    loop: start=0, step=1, limit=6
    $region2: #{mapping_model_forward.3} parent=1 // loop_pre_header
      _
    $region3: #{mapping_model_forward.3} parent=1 // loop_header
      %s12 = sphi 0, %s16
      %p13 = scmp.ge.s32.totalorder %s12, 6
      %s19 = sphi 0, %s31
      %s20 = sphi 0, %s27
      %s21 = sphi 0, %s19
      %s22 = sphi 0, %s20
      %s23 = sphi 0, %s21
      %s24 = sphi 0, %s22
      %s34 = sphi 0, %s36
      %s37 = sphi 0, %s34
      %s38 = sphi 0, %s37
      %s54 = sphi 0, %s38
      %s60 = sphi 0, %s62
      %s63 = sphi 0, %s60
      %s64 = sphi 0, %s63
      %s80 = sphi 0, %s64
      %s86 = sphi 0, %s88
      %s89 = sphi 0, %s86
      %s90 = sphi 0, %s89
      %s106 = sphi 0, %s90
      %s114 = sphi 0, %s116
      %s117 = sphi 0, %s114
      %s118 = sphi 0, %s117
      %s134 = sphi 0, %s118
    $region4: #{mapping_model_forward.3} parent=1 // loop_header_branch
      %15 = sbr.rel (%p13) target = $region8
    $region5: #{mapping_model_forward.3} parent=1 // loop_body
      %s17 = ssub.s32 %s12, 1
      %s18 = ssub.s32 %s12, 2
      %s25 = sadd.s32 1, %s20
      %p26 = scmp.ge.s32.totalorder %s25, 1
      %s27 = scalar_select %p26, 0, %s25
      %s28 = sadd.s32 1, %s19
      %s29 = scalar_select %p26, %s28, %s19
      %p30 = scmp.ge.s32.totalorder %s29, 4
      %s31 = scalar_select %p30, 0, %s29
      %s32 = ssub.s32 %s20, %s27
      %p33 = scmp.eq.s32.totalorder %s32, 0
      %s35 = sadd.s32 %s34, 1
      %s36 = scalar_select %p33, %s34, %s35
      %p39 = pneg %p33
      %p40 = scmp.eq.s32.totalorder %s12, 3
      %p41 = por %p39, %p40
      %p42 = scmp.ne.s32.totalorder %s34, %s37
      %p43 = scmp.eq.s32.totalorder %s12, 0
      %p44 = por %p42, %p43
      %p45 = scmp.ne.s32.totalorder %s34, %s37
      %p46 = scmp.eq.s32.totalorder %s17, 3
      %p47 = por %p45, %p46
      %p48 = scmp.ne.s32.totalorder %s37, %s38
      %p49 = scmp.eq.s32.totalorder %s17, 0
      %p50 = por %p48, %p49
      %p51 = scmp.ne.s32.totalorder %s37, %s38
      %p52 = scmp.eq.s32.totalorder %s18, 3
      %p53 = por %p51, %p52
      %p55 = scmp.ne.s32.totalorder %s38, %s54
      %p56 = scmp.eq.s32.totalorder %s18, 0
      %p57 = por %p55, %p56
      %s58 = ssub.s32 %s19, %s31
      %p59 = scmp.eq.s32.totalorder %s58, 0
      %s61 = sadd.s32 %s60, 1
      %s62 = scalar_select %p59, %s60, %s61
      %p65 = pneg %p59
      %p66 = scmp.eq.s32.totalorder %s12, 3
      %p67 = por %p65, %p66
      %p68 = scmp.ne.s32.totalorder %s60, %s63
      %p69 = scmp.eq.s32.totalorder %s12, 0
      %p70 = por %p68, %p69
      %p71 = scmp.ne.s32.totalorder %s60, %s63
      %p72 = scmp.eq.s32.totalorder %s17, 3
      %p73 = por %p71, %p72
      %p74 = scmp.ne.s32.totalorder %s63, %s64
      %p75 = scmp.eq.s32.totalorder %s17, 0
      %p76 = por %p74, %p75
      %p77 = scmp.ne.s32.totalorder %s63, %s64
      %p78 = scmp.eq.s32.totalorder %s18, 3
      %p79 = por %p77, %p78
      %p81 = scmp.ne.s32.totalorder %s64, %s80
      %p82 = scmp.eq.s32.totalorder %s18, 0
      %p83 = por %p81, %p82
      %s84 = ssub.s32 %s19, %s31
      %p85 = scmp.eq.s32.totalorder %s84, 0
      %s87 = sadd.s32 %s86, 1
      %s88 = scalar_select %p85, %s86, %s87
      %p91 = pneg %p85
      %p92 = scmp.eq.s32.totalorder %s12, 3
      %p93 = por %p91, %p92
      %p94 = scmp.ne.s32.totalorder %s86, %s89
      %p95 = scmp.eq.s32.totalorder %s12, 0
      %p96 = por %p94, %p95
      %p97 = scmp.ne.s32.totalorder %s86, %s89
      %p98 = scmp.eq.s32.totalorder %s17, 3
      %p99 = por %p97, %p98
      %p100 = scmp.ne.s32.totalorder %s89, %s90
      %p101 = scmp.eq.s32.totalorder %s17, 0
      %p102 = por %p100, %p101
      %p103 = scmp.ne.s32.totalorder %s89, %s90
      %p104 = scmp.eq.s32.totalorder %s18, 3
      %p105 = por %p103, %p104
      %p107 = scmp.ne.s32.totalorder %s90, %s106
      %p108 = scmp.eq.s32.totalorder %s18, 0
      %p109 = por %p107, %p108
      %s110 = ssub.s32 %s20, %s27
      %s111 = ssub.s32 %s19, %s31
      %s112 = sor.u32 %s110, %s111
      %p113 = scmp.eq.s32.totalorder %s112, 0
      %s115 = sadd.s32 %s114, 1
      %s116 = scalar_select %p113, %s114, %s115
      %p119 = pneg %p113
      %p120 = scmp.eq.s32.totalorder %s12, 3
      %p121 = por %p119, %p120
      %p122 = scmp.ne.s32.totalorder %s114, %s117
      %p123 = scmp.eq.s32.totalorder %s12, 0
      %p124 = por %p122, %p123
      %p125 = scmp.ne.s32.totalorder %s114, %s117
      %p126 = scmp.eq.s32.totalorder %s17, 3
      %p127 = por %p125, %p126
      %p128 = scmp.ne.s32.totalorder %s117, %s118
      %p129 = scmp.eq.s32.totalorder %s17, 0
      %p130 = por %p128, %p129
      %p131 = scmp.ne.s32.totalorder %s117, %s118
      %p132 = scmp.eq.s32.totalorder %s18, 3
      %p133 = por %p131, %p132
      %p135 = scmp.ne.s32.totalorder %s118, %s134
      %p136 = scmp.eq.s32.totalorder %s18, 0
      %p137 = por %p135, %p136
      %p138 = scmp.le.s32.totalorder 1, %s12
      %p139 = scmp.lt.s32.totalorder %s12, 5
      %p140 = pnand %p138, %p139
      %p141 = pneg %p140
      // Predicated region
      $region9: #{mapping_model_forward.3} parent=5 // pred_check
        _
      $region10: #{mapping_model_forward.3} parent=5 // pred_check_branch
        %143 = sbr.rel (%p140) target = $region12
      $region11: #{mapping_model_forward.3} parent=5 // pred_region
        %s144 = ssub.s32 %s12, 1
        // Predicated region
        $region13: #{mapping_model_forward.3} parent=11 // pred_check
          %p145 = pneg %p50
        $region14: #{mapping_model_forward.3} parent=11 // pred_check_branch
          %147 = sbr.rel (%p145) target = $region16
        $region15: #{mapping_model_forward.3} parent=11 // pred_region
          %s148 = smul.u32 2, %s22
          %p149 = scmp.lt.s32.totalorder %s148, 1
          %s150 = scalar_select %p149, %s148, 1
          %s151 = smul.addr %s150, 2
          %s152 = smul.addr %s151, 8
          %s153 = scalar_lea.vmem %s0, %s152
          %s154 = smul.u32 2, %s22
        $region16: #{mapping_model_forward.3} parent=11 // pred_fallthru
          _
      $region12: #{mapping_model_forward.3} parent=5 // pred_fallthru
        _
      %p155 = scmp.lt.s32.totalorder %s12, 4
      // Predicated region
      $region17: #{mapping_model_forward.3} parent=5 // pred_check
        %p156 = pneg %p155
      $region18: #{mapping_model_forward.3} parent=5 // pred_check_branch
        %158 = sbr.rel (%p156) target = $region20
      $region19: #{mapping_model_forward.3} parent=5 // pred_region
        // Predicated region
        $region21: #{mapping_model_forward.3} parent=19 // pred_check
          %p159 = pneg %p70
        $region22: #{mapping_model_forward.3} parent=19 // pred_check_branch
          %161 = sbr.rel (%p159) target = $region24
        $region23: #{mapping_model_forward.3} parent=19 // pred_region
          %s162 = sand.u32 %s60, 1
          %s163 = scalar_lea.sflag [#allocation3], %s162
          %s164 = sand.u32 %s60, 1
          %s165 = smul.addr %s164, 512
          %s166 = scalar_lea.vmem [#allocation2], %s165
          %s167 = smul.u32 2, %s19
          %s169 = ssub.s32 8192, 8192
          %170 = vsyncadd %s163, %s169
          %s171 = smul.addr %s167, 128
          %s172 = scalar_lea.hbm %s1, %s171
          %s173 = sshll.u32 %s166, 4
          %s174 = int_to_ptr.vmem [resolvable:$true] %s173
          %179 = dma.hbm_to_vmem [thread:$0]  %s172, 8192, %s174, %s163, 1024, 256, 16
        $region24: #{mapping_model_forward.3} parent=19 // pred_fallthru
          _
        // Predicated region
        $region25: #{mapping_model_forward.3} parent=19 // pred_check
          %p180 = pneg %p96
        $region26: #{mapping_model_forward.3} parent=19 // pred_check_branch
          %182 = sbr.rel (%p180) target = $region28
        $region27: #{mapping_model_forward.3} parent=19 // pred_region
          %s183 = smul.u32 2, %s19
          %p184 = scmp.lt.s32.totalorder %s183, 7
          %s185 = scalar_select %p184, %s183, 7
          %s186 = scalar_lea.vmem %s2, %s185
          %s187 = smul.u32 2, %s19
        $region28: #{mapping_model_forward.3} parent=19 // pred_fallthru
          _
      $region20: #{mapping_model_forward.3} parent=5 // pred_fallthru
        _
      %p188 = scmp.le.s32.totalorder 1, %s12
      %p189 = scmp.lt.s32.totalorder %s12, 5
      %p190 = pnand %p188, %p189
      %p191 = pneg %p190
      // Predicated region
      $region29: #{mapping_model_forward.3} parent=5 // pred_check
        _
      $region30: #{mapping_model_forward.3} parent=5 // pred_check_branch
        %193 = sbr.rel (%p190) target = $region32
      $region31: #{mapping_model_forward.3} parent=5 // pred_region
        %s194 = ssub.s32 %s12, 1
        %s195 = sand.u32 %s63, 1
        %s196 = scalar_lea.sflag [#allocation3], %s195
        %s197 = sand.u32 %s63, 1
        %s198 = smul.addr %s197, 512
        %s199 = scalar_lea.vmem [#allocation2], %s198
        // Predicated region
        $region33: #{mapping_model_forward.3} parent=31 // pred_check
          %p200 = pneg %p76
        $region34: #{mapping_model_forward.3} parent=31 // pred_check_branch
          %202 = sbr.rel (%p200) target = $region36
        $region35: #{mapping_model_forward.3} parent=31 // pred_region
          %203 = dma.done %s196, 8192
        $region36: #{mapping_model_forward.3} parent=31 // pred_fallthru
          _
        %s204 = smul.u32 2, %s22
        %p205 = scmp.lt.s32.totalorder %s204, 1
        %s206 = scalar_select %p205, %s204, 1
        %s207 = smul.addr %s206, 2
        %s208 = smul.addr %s207, 8
        %s209 = scalar_lea.vmem %s0, %s208
        %p210 = pneg %p50
        %p211 = pneg %p47
        %s212 = sand.u32 %s63, 1
        %s213 = scalar_lea.sflag [#allocation3], %s212
        %s214 = sand.u32 %s63, 1
        %s215 = smul.addr %s214, 512
        %s216 = scalar_lea.vmem [#allocation2], %s215
        %p217 = pneg %p76
        %p218 = pneg %p73
        %s219 = smul.u32 2, %s21
        %p220 = scmp.lt.s32.totalorder %s219, 7
        %s221 = scalar_select %p220, %s219, 7
        %s222 = scalar_lea.vmem %s2, %s221
        %p223 = pneg %p102
        %p224 = pneg %p99
        %p225 = pneg %p130
        %p226 = pneg %p127
        %s227 = sand.u32 %s117, 1
        %s228 = sand.u32 %s117, 1
        %s229 = smul.addr %s228, 32
        %s230 = scalar_lea.vmem [#allocation4], %s229
        %s231 = smul.u32 2, %s22
        %p232 = scmp.lt.s32.totalorder %s231, 1
        %s233 = scalar_select %p232, %s231, 1
        %s234 = smul.addr %s233, 2
        %s235 = smul.addr %s234, 8
        %s236 = scalar_lea.vmem %s0, %s235
        %s237 = smul.u32 2, %s22
        %s238 = smul.u32 2, %s21
        %s239 = smul.u32 2, %s21
        %p240 = scmp.lt.s32.totalorder %s239, 7
        %s241 = scalar_select %p240, %s239, 7
        %s242 = scalar_lea.vmem %s2, %s241
        %s243 = smul.u32 2, %s21
        %s244 = smul.u32 2, %s22
        %s245 = smul.u32 2, %s21
        %v246 = vld [vmem:[%s236] sm:$0xff]
        %v247 = vld [vmem:[%s236 + $0x8] sm:$0xff]
        %v248 = vld [vmem:[%s236 + $0x10] sm:$0xff]
        %v249 = vld [vmem:[%s236 + $0x18] sm:$0xff]
        %v250 = vld [vmem:[%s199] sm:$0xff]
        %v251 = vld [vmem:[%s199 + $0x8] sm:$0xff]
        %v252 = vld [vmem:[%s199 + $0x10] sm:$0xff]
        %v253 = vld [vmem:[%s199 + $0x18] sm:$0xff]
        %v254 = vld [vmem:[%s199 + $0x20] sm:$0xff]
        %v255 = vld [vmem:[%s199 + $0x28] sm:$0xff]
        %v256 = vld [vmem:[%s199 + $0x30] sm:$0xff]
        %v257 = vld [vmem:[%s199 + $0x38] sm:$0xff]
        %v258 = vld [vmem:[%s199 + $0x40] sm:$0xff]
        %v259 = vld [vmem:[%s199 + $0x48] sm:$0xff]
        %v260 = vld [vmem:[%s199 + $0x50] sm:$0xff]
        %v261 = vld [vmem:[%s199 + $0x58] sm:$0xff]
        %v262 = vld [vmem:[%s199 + $0x60] sm:$0xff]
        %v263 = vld [vmem:[%s199 + $0x68] sm:$0xff]
        %v264 = vld [vmem:[%s199 + $0x70] sm:$0xff]
        %v265 = vld [vmem:[%s199 + $0x78] sm:$0xff]
        %v266 = vld [vmem:[%s199 + $0x80] sm:$0xff]
        %v267 = vld [vmem:[%s199 + $0x88] sm:$0xff]
        %v268 = vld [vmem:[%s199 + $0x90] sm:$0xff]
        %v269 = vld [vmem:[%s199 + $0x98] sm:$0xff]
        %v270 = vld [vmem:[%s199 + $0xa0] sm:$0xff]
        %v271 = vld [vmem:[%s199 + $0xa8] sm:$0xff]
        %v272 = vld [vmem:[%s199 + $0xb0] sm:$0xff]
        %v273 = vld [vmem:[%s199 + $0xb8] sm:$0xff]
        %v274 = vld [vmem:[%s199 + $0xc0] sm:$0xff]
        %v275 = vld [vmem:[%s199 + $0xc8] sm:$0xff]
        %v276 = vld [vmem:[%s199 + $0xd0] sm:$0xff]
        %v277 = vld [vmem:[%s199 + $0xd8] sm:$0xff]
        %v278 = vld [vmem:[%s199 + $0xe0] sm:$0xff]
        %v279 = vld [vmem:[%s199 + $0xe8] sm:$0xff]
        %v280 = vld [vmem:[%s199 + $0xf0] sm:$0xff]
        %v281 = vld [vmem:[%s199 + $0xf8] sm:$0xff]
        %v282 = vld [vmem:[%s199 + $0x100] sm:$0xff]
        %v283 = vld [vmem:[%s199 + $0x108] sm:$0xff]
        %v284 = vld [vmem:[%s199 + $0x110] sm:$0xff]
        %v285 = vld [vmem:[%s199 + $0x118] sm:$0xff]
        %v286 = vld [vmem:[%s199 + $0x120] sm:$0xff]
        %v287 = vld [vmem:[%s199 + $0x128] sm:$0xff]
        %v288 = vld [vmem:[%s199 + $0x130] sm:$0xff]
        %v289 = vld [vmem:[%s199 + $0x138] sm:$0xff]
        %v290 = vld [vmem:[%s199 + $0x140] sm:$0xff]
        %v291 = vld [vmem:[%s199 + $0x148] sm:$0xff]
        %v292 = vld [vmem:[%s199 + $0x150] sm:$0xff]
        %v293 = vld [vmem:[%s199 + $0x158] sm:$0xff]
        %v294 = vld [vmem:[%s199 + $0x160] sm:$0xff]
        %v295 = vld [vmem:[%s199 + $0x168] sm:$0xff]
        %v296 = vld [vmem:[%s199 + $0x170] sm:$0xff]
        %v297 = vld [vmem:[%s199 + $0x178] sm:$0xff]
        %v298 = vld [vmem:[%s199 + $0x180] sm:$0xff]
        %v299 = vld [vmem:[%s199 + $0x188] sm:$0xff]
        %v300 = vld [vmem:[%s199 + $0x190] sm:$0xff]
        %v301 = vld [vmem:[%s199 + $0x198] sm:$0xff]
        %v302 = vld [vmem:[%s199 + $0x1a0] sm:$0xff]
        %v303 = vld [vmem:[%s199 + $0x1a8] sm:$0xff]
        %v304 = vld [vmem:[%s199 + $0x1b0] sm:$0xff]
        %v305 = vld [vmem:[%s199 + $0x1b8] sm:$0xff]
        %v306 = vld [vmem:[%s199 + $0x1c0] sm:$0xff]
        %v307 = vld [vmem:[%s199 + $0x1c8] sm:$0xff]
        %v308 = vld [vmem:[%s199 + $0x1d0] sm:$0xff]
        %v309 = vld [vmem:[%s199 + $0x1d8] sm:$0xff]
        %v310 = vld [vmem:[%s199 + $0x1e0] sm:$0xff]
        %v311 = vld [vmem:[%s199 + $0x1e8] sm:$0xff]
        %v312 = vld [vmem:[%s199 + $0x1f0] sm:$0xff]
        %v313 = vld [vmem:[%s199 + $0x1f8] sm:$0xff]
        %v314 = vld [vmem:[%s242] sm:$0x3]
        %v316 = vlaneseq
        %v317 = vshrl.u32 %v316, 7
        %v318 = vsub.s32 0, %v317
        %v319 = vrot.slane %v314, %v318
        %v320 = vlaneseq
        %v321 = vshrl.u32 %v320, 7
        %v322 = vsub.s32 1, %v321
        %v323 = vrot.slane %v314, %v322
        %326 = vmatprep.subr.mxu0 %v251
        %327 = vmatpush1.msra.mxu0 %v250
        %328 = vmatprep.subr.mxu0 %v253
        %329 = vmatpush1.msra.mxu0 %v252
        %330 = vmatprep.subr.mxu0 %v255
        %331 = vmatpush1.msra.mxu0 %v254
        %332 = vmatprep.subr.mxu0 %v257
        %333 = vmatpush1.msra.mxu0 %v256
        %334 = vmatprep.subr.mxu0 %v259
        %335 = vmatpush1.msra.mxu0 %v258
        %336 = vmatprep.subr.mxu0 %v261
        %337 = vmatpush1.msra.mxu0 %v260
        %338 = vmatprep.subr.mxu0 %v263
        %339 = vmatpush1.msra.mxu0 %v262
        %340 = vmatprep.subr.mxu0 %v265
        %341 = vmatpush1.msra.mxu0 %v264
        %342 = vmatprep.subr.mxu0 %v267
        %343 = vmatpush1.msra.mxu0 %v266
        %344 = vmatprep.subr.mxu0 %v269
        %345 = vmatpush1.msra.mxu0 %v268
        %346 = vmatprep.subr.mxu0 %v271
        %347 = vmatpush1.msra.mxu0 %v270
        %348 = vmatprep.subr.mxu0 %v273
        %349 = vmatpush1.msra.mxu0 %v272
        %350 = vmatprep.subr.mxu0 %v275
        %351 = vmatpush1.msra.mxu0 %v274
        %352 = vmatprep.subr.mxu0 %v277
        %353 = vmatpush1.msra.mxu0 %v276
        %354 = vmatprep.subr.mxu0 %v279
        %355 = vmatpush1.msra.mxu0 %v278
        %356 = vmatprep.subr.mxu0 %v281
        %357 = vmatpush1.msra.mxu0 %v280
        %358 = vmatprep.subr.mxu0 %v283
        %359 = vmatpush1.msra.mxu0 %v282
        %360 = vmatprep.subr.mxu0 %v285
        %361 = vmatpush1.msra.mxu0 %v284
        %362 = vmatprep.subr.mxu0 %v287
        %363 = vmatpush1.msra.mxu0 %v286
        %364 = vmatprep.subr.mxu0 %v289
        %365 = vmatpush1.msra.mxu0 %v288
        %366 = vmatprep.subr.mxu0 %v291
        %367 = vmatpush1.msra.mxu0 %v290
        %368 = vmatprep.subr.mxu0 %v293
        %369 = vmatpush1.msra.mxu0 %v292
        %370 = vmatprep.subr.mxu0 %v295
        %371 = vmatpush1.msra.mxu0 %v294
        %372 = vmatprep.subr.mxu0 %v297
        %373 = vmatpush1.msra.mxu0 %v296
        %374 = vmatprep.subr.mxu0 %v299
        %375 = vmatpush1.msra.mxu0 %v298
        %376 = vmatprep.subr.mxu0 %v301
        %377 = vmatpush1.msra.mxu0 %v300
        %378 = vmatprep.subr.mxu0 %v303
        %379 = vmatpush1.msra.mxu0 %v302
        %380 = vmatprep.subr.mxu0 %v305
        %381 = vmatpush1.msra.mxu0 %v304
        %382 = vmatprep.subr.mxu0 %v307
        %383 = vmatpush1.msra.mxu0 %v306
        %384 = vmatprep.subr.mxu0 %v309
        %385 = vmatpush1.msra.mxu0 %v308
        %386 = vmatprep.subr.mxu0 %v311
        %387 = vmatpush1.msra.mxu0 %v310
        %388 = vmatprep.subr.mxu0 %v313
        %389 = vmatpush1.msra.mxu0 %v312
        %390 = vmatprep.mubr.f32.mxu0 %v247
        %391 = vmatmul.mubr.f32.gmra.mrb[0].mxu0 %v246
        %v392 = vpop.f32.mrb[0].mxu0
        %v393 = vadd.f32 %v319, %v392
        %v394 = vpop.f32.mrb[0].mxu0
        %v395 = vadd.f32 %v323, %v394
        %396 = vmatprep.mubr.f32.mxu0 %v249
        %397 = vmatmul.mubr.f32.gmra.mrb[0].mxu0 %v248
        %v398 = vpop.f32.mrb[0].mxu0
        %v399 = vadd.f32 %v319, %v398
        %v400 = vpop.f32.mrb[0].mxu0
        %v401 = vadd.f32 %v323, %v400
        %402 = vdwg.mxu0
        %v403 = vmul.f32 %v393, 0.5
        %v404 = vmul.f32 %v395, 0.5
        %v405 = vmul.f32 %v399, 0.5
        %v406 = vmul.f32 %v401, 0.5
        %v407 = vmul.f32 %v393, 0.70710677
        %v408 = vmul.f32 %v395, 0.70710677
        %v409 = vmul.f32 %v399, 0.70710677
        %v410 = vmul.f32 %v401, 0.70710677
        %v411 = verf.f32.pop %v407
        %v412 = verf.f32.pop %v408
        %v413 = verf.f32.pop %v409
        %v414 = verf.f32.pop %v410
        %v415 = vadd.f32 %v411, 1.0
        %v416 = vadd.f32 %v412, 1.0
        %v417 = vadd.f32 %v413, 1.0
        %v418 = vadd.f32 %v414, 1.0
        %v419 = vmul.f32 %v403, %v415
        %v420 = vmul.f32 %v404, %v416
        %v421 = vmul.f32 %v405, %v417
        %v422 = vmul.f32 %v406, %v418
        %423 = vst [vmem:[%s230] sm:$0xff] %v419
        %424 = vst [vmem:[%s230 + $0x8] sm:$0xff] %v420
        %425 = vst [vmem:[%s230 + $0x10] sm:$0xff] %v421
        %426 = vst [vmem:[%s230 + $0x18] sm:$0xff] %v422
        %s427 = sand.u32 %s117, 1
        %s428 = sand.u32 %s117, 1
        %s429 = smul.addr %s428, 32
        %s430 = scalar_lea.vmem [#allocation4], %s429
        // Predicated region
        $region37: #{mapping_model_forward.3} parent=31 // pred_check
          %p431 = pneg %p127
        $region38: #{mapping_model_forward.3} parent=31 // pred_check_branch
          %433 = sbr.rel (%p431) target = $region40
        $region39: #{mapping_model_forward.3} parent=31 // pred_region
          %s434 = smul.u32 2, %s22
          %s435 = smul.u32 2, %s21
          %s436 = smul.addr %s434, 8
          %s437 = sadd.s32 %s435, %s436
          %s438 = smul.addr %s437, 8
          %s439 = scalar_lea.vmem %s3, %s438
          // Predicated region
          $region41: #{mapping_model_forward.3} parent=39 // pred_check
            _
          $region42: #{mapping_model_forward.3} parent=39 // pred_check_branch
            %441 = sbr.rel (0) target = $region44
          $region43: #{mapping_model_forward.3} parent=39 // pred_region
            // Predicated region
            $region45: #{mapping_model_forward.3} parent=43 // pred_check
              _
            $region46: #{mapping_model_forward.3} parent=43 // pred_check_branch
              %443 = sbr.rel (0) target = $region48
            $region47: #{mapping_model_forward.3} parent=43 // pred_region
              loop: start=0, step=1, limit=1
              $region49: #{mapping_model_forward.3} parent=47 // loop_pre_header
                _
              $region50: #{mapping_model_forward.3} parent=47 // loop_header
                %s445 = sphi 0, %s449
                %p446 = scmp.ge.s32.totalorder %s445, 1
                %s450 = sphi %s430, %s430
                %s451 = sphi %s439, %s439
              $region51: #{mapping_model_forward.3} parent=47 // loop_header_branch
                %448 = sbr.rel (%p446) target = $region55
              $region52: #{mapping_model_forward.3} parent=47 // loop_body
                %v452 = vld [vmem:[%s450] sm:$0xff]
                %453 = vst [vmem:[%s451] sm:$0xff] %v452
                %v454 = vld [vmem:[%s450 + $0x8] sm:$0xff]
                %455 = vst [vmem:[%s451 + $0x8] sm:$0xff] %v454
                %v456 = vld [vmem:[%s450 + $0x10] sm:$0xff]
                %457 = vst [vmem:[%s451 + $0x40] sm:$0xff] %v456
                %v458 = vld [vmem:[%s450 + $0x18] sm:$0xff]
                %459 = vst [vmem:[%s451 + $0x48] sm:$0xff] %v458
              $region53: #{mapping_model_forward.3} parent=47 // loop_footer
                %s449 = sadd.s32 1, %s445
              $region54: #{mapping_model_forward.3} parent=47 // loop_footer_branch
                %444 = sbr.rel target = $region50
              $region55: #{mapping_model_forward.3} parent=47 // loop_exit
                _
            $region48: #{mapping_model_forward.3} parent=43 // pred_fallthru
              _
            // Predicated region
            $region56: #{mapping_model_forward.3} parent=43 // pred_check
              _
            $region57: #{mapping_model_forward.3} parent=43 // pred_check_branch
              %461 = sbr.rel target = $region59
            $region58: #{mapping_model_forward.3} parent=43 // pred_region
              _
            $region59: #{mapping_model_forward.3} parent=43 // pred_fallthru
              _
          $region44: #{mapping_model_forward.3} parent=39 // pred_fallthru
            _
          %462 = vnop
        $region40: #{mapping_model_forward.3} parent=31 // pred_fallthru
          _
      $region32: #{mapping_model_forward.3} parent=5 // pred_fallthru
        _
      %p463 = scmp.le.s32.totalorder 2, %s12
      // Predicated region
      $region60: #{mapping_model_forward.3} parent=5 // pred_check
        %p464 = pneg %p463
      $region61: #{mapping_model_forward.3} parent=5 // pred_check_branch
        %466 = sbr.rel (%p464) target = $region63
      $region62: #{mapping_model_forward.3} parent=5 // pred_region
        %s467 = ssub.s32 %s12, 2
        // Predicated region
        $region64: #{mapping_model_forward.3} parent=62 // pred_check
          %p468 = pneg %p133
        $region65: #{mapping_model_forward.3} parent=62 // pred_check_branch
          %470 = sbr.rel (%p468) target = $region67
        $region66: #{mapping_model_forward.3} parent=62 // pred_region
          %s471 = sand.u32 %s118, 1
          %s472 = sand.u32 %s118, 1
          %s473 = smul.addr %s472, 32
          %s474 = scalar_lea.vmem [#allocation4], %s473
        $region67: #{mapping_model_forward.3} parent=62 // pred_fallthru
          _
      $region63: #{mapping_model_forward.3} parent=5 // pred_fallthru
        _
    $region6: #{mapping_model_forward.3} parent=1 // loop_footer
      %s16 = sadd.s32 1, %s12
    $region7: #{mapping_model_forward.3} parent=1 // loop_footer_branch
      %11 = sbr.rel target = $region3
    $region8: #{mapping_model_forward.3} parent=1 // loop_exit
      _
    %475 = vsyncpa [#allocation3], 1
    %s476 = scalar_lea.sflag [#allocation3], 1
    %477 = vsyncpa %s476, 1

</llo_original>
